<compile_context>
chip_gen: v7x
topology: tpu7x:2x2x1
jax: 0.10.0
libtpu: 0.0.40
codegen_flags: <defaults>
</compile_context>

<pallas_src>
import jax
import jax.numpy as jnp
from jax.experimental import pallas as pl
from jax.experimental.pallas import tpu as pltpu


def location_block_kernel(x_ref, w_ref, o_ref):
    """One grid step: (TM, S*C_in) @ (S*C_in, N_pad) -> (TM, N_pad)."""
    o_ref[...] = jnp.dot(
        x_ref[...], w_ref[...], preferred_element_type=jnp.float32
    ).astype(o_ref.dtype)


def _round_up(x, m):
    return ((x + m - 1) // m) * m


def location_block(attention_weights, conv_weight, proj_weight,
                   *, rows_per_tile=1024, compute_in_bf16=False):
    """attention_weights: (B, 2, T), conv_weight: (F, 2, K), proj_weight: (A, F).

    Returns (B, T_out, A), T_out == T for odd K (matches the PyTorch forward).
    """
    B, C_in, T = attention_weights.shape
    F_dim, C_in_w, K = conv_weight.shape
    assert C_in_w == C_in
    A = proj_weight.shape[0]
    pad = (K - 1) // 2
    P = 8  # timesteps packed per lane-row
    out_dtype = attention_weights.dtype

    # ---- fused block-Toeplitz weight (tiny, built at trace time) ----
    w_comb = jnp.einsum("fck,af->kca", conv_weight, proj_weight)        # (K, C_in, A)
    S = P + K - 1
    w_t = jnp.zeros((S, C_in, P, A), dtype=w_comb.dtype)
    for j in range(P):
        w_t = w_t.at[j:j + K, :, j, :].set(w_comb)                      # diagonal blocks
    w_t = w_t.reshape(S * C_in, P * A)                                  # (24, 128) for demo

    N = P * A
    N_pad = _round_up(N, 128)                                           # == N when A == 16
    if N_pad != N:
        w_t = jnp.pad(w_t, ((0, 0), (0, N_pad - N)))

    # ---- pack the input: 8 output timesteps + (K-1) halo per packed row ----
    T_out = T + 2 * pad - K + 1                 # == T for odd K
    R = pl.cdiv(T_out, P)                       # packed rows per batch element
    total_len = R * P + K - 1                   # padded time span a row window may touch
    x = jnp.transpose(attention_weights, (0, 2, 1))                     # (B, T, C_in)
    x_p = jnp.pad(x, ((0, 0), (pad, total_len - pad - T), (0, 0)))      # (B, total_len, C_in)
    # Window s picks times {s, s+P, ..., s+(R-1)P}; halo zeros come from the per-batch
    # padding above (no cross-batch leakage). Read duplication ~ (P+K-1)/P ≈ 1.5x.
    windows = [x_p[:, s:s + (R - 1) * P + 1:P, :] for s in range(S)]    # S x (B, R, C_in)
    x_rows = jnp.stack(windows, axis=2).reshape(B * R, S * C_in)        # (B*R, S*C_in)

    # ---- tile packed rows over a parallel grid ----
    M_rows = B * R
    TM = _round_up(min(rows_per_tile, _round_up(M_rows, 16)), 16)
    M_rows_pad = _round_up(M_rows, TM)
    if M_rows_pad != M_rows:
        x_rows = jnp.pad(x_rows, ((0, M_rows_pad - M_rows), (0, 0)))

    if compute_in_bf16:
        # Halves input-side HBM bytes on this mem-bound kernel; precision tradeoff vs the
        # f32 PyTorch module (expect ~1e-2 abs error).
        x_rows = x_rows.astype(jnp.bfloat16)
        w_t = w_t.astype(jnp.bfloat16)

    KC = S * C_in
    grid = (M_rows_pad // TM,)

    out_rows = pl.pallas_call(
        location_block_kernel,
        out_shape=jax.ShapeDtypeStruct((M_rows_pad, N_pad), out_dtype),
        grid_spec=pltpu.PrefetchScalarGridSpec(
            num_scalar_prefetch=0,
            grid=grid,
            in_specs=[
                pl.BlockSpec((TM, KC), lambda i: (i, 0)),        # packed input rows
                pl.BlockSpec((KC, N_pad), lambda i: (0, 0)),     # resident fused weight
            ],
            out_specs=pl.BlockSpec((TM, N_pad), lambda i: (i, 0)),
        ),
        compiler_params=pltpu.CompilerParams(
            dimension_semantics=("parallel",),   # shards across v7x's 2 TensorCores
        ),
    )(x_rows, w_t)

    # Unpack: row m = b*R + r, column n = j*A + a  ->  out[b, r*P + j, a]
    out = out_rows[:M_rows, :N].reshape(B, R * P, A)[:, :T_out, :]
    return out


def reference(attention_weights, conv_weight, proj_weight):
    """Pure-JAX reference with PyTorch Conv1d/Linear semantics (for verification)."""
    B, C_in, T = attention_weights.shape
    F_dim, _, K = conv_weight.shape
    pad = (K - 1) // 2
    x_pad = jnp.pad(attention_weights, ((0, 0), (0, 0), (pad, pad)))
    conv_out = jnp.zeros((B, F_dim, T), jnp.float32)
    for k in range(K):
        conv_out = conv_out + jnp.einsum(
            "bct,fc->bft", x_pad[:, :, k:k + T], conv_weight[:, :, k]
        )
    conv_out = jnp.transpose(conv_out, (0, 2, 1))             # (B, T, F)
    return jnp.einsum("btf,af->bta", conv_out, proj_weight)   # (B, T, A)


if __name__ == "__main__":
    # Small shapes consistent with the module: batch=2, seq=16,
    # attention_n_filters=8, attention_kernel_size=5, attention_dim=16.
    B, T = 2, 16
    n_filters, kernel_size, attn_dim = 8, 5, 16

    key = jax.random.PRNGKey(0)
    k1, k2, k3 = jax.random.split(key, 3)
    attention_weights = jax.random.normal(k1, (B, 2, T), jnp.float32)
    conv_weight = 0.1 * jax.random.normal(k2, (n_filters, 2, kernel_size), jnp.float32)
    proj_weight = 0.1 * jax.random.normal(k3, (attn_dim, n_filters), jnp.float32)

    out = location_block(attention_weights, conv_weight, proj_weight)
    out = jax.block_until_ready(out)

    ref = reference(attention_weights, conv_weight, proj_weight)
    assert out.shape == (B, T, attn_dim), out.shape
    assert jnp.allclose(out, ref, atol=1e-5, rtol=1e-5), "mismatch vs reference"

    print("KERNEL_OK")
</pallas_src>

<mosaic_0001>
module attributes {stable_mosaic.version = 11 : i64} {
  func.func @location_block_kernel(%arg0: i32, %arg1: memref<16x24xf32, #tpu.memory_space<vmem>>, %arg2: memref<24x128xf32, #tpu.memory_space<vmem>>, %arg3: memref<16x128xf32, #tpu.memory_space<vmem>>) attributes {dimension_semantics = [#tpu.dimension_semantics<parallel>], iteration_bounds = array<i64: 1>, scalar_prefetch = 0 : i64, scratch_operands = 0 : i64, tpu.core_type = #tpu.core_type<tc>, window_params = [{transform_indices = @transform_0, window_bounds = array<i64: 16, 24>}, {pipeline_mode = #tpu.pipeline_mode<synchronous>, transform_indices = @transform_1, window_bounds = array<i64: 24, 128>}, {transform_indices = @transform_2, window_bounds = array<i64: 16, 128>}]} {
    %c0 = arith.constant 0 : index
    %c0_0 = arith.constant 0 : index
    %0 = vector.load %arg1[%c0, %c0_0] : memref<16x24xf32, #tpu.memory_space<vmem>>, vector<16x24xf32>
    %c0_1 = arith.constant 0 : index
    %c0_2 = arith.constant 0 : index
    %1 = vector.load %arg2[%c0_1, %c0_2] : memref<24x128xf32, #tpu.memory_space<vmem>>, vector<24x128xf32>
    %cst = arith.constant dense<0.000000e+00> : vector<16x128xf32>
    %2 = tpu.matmul %0, %1, %cst {dimension_numbers = #tpu.dot_dimension_numbers<[1], [0], [0], [1], [0, 0, 1, 1], [], []>} : vector<16x24xf32>, vector<24x128xf32>, vector<16x128xf32> -> vector<16x128xf32>
    %c0_3 = arith.constant 0 : index
    %c0_4 = arith.constant 0 : index
    %3 = vector.load %arg3[%c0_3, %c0_4] : memref<16x128xf32, #tpu.memory_space<vmem>>, vector<16x128xf32>
    tpu.vector_store %arg3[%c0_3, %c0_4], %2 {strides = array<i32>} : memref<16x128xf32, #tpu.memory_space<vmem>>, vector<16x128xf32>,
    return
  }
  func.func @transform_0(%arg0: i32) -> (i32, i32) {
    %c0_i32 = arith.constant 0 : i32
    %c0_i32_0 = arith.constant 0 : i32
    return %arg0, %c0_i32 : i32, i32
  }
  func.func @transform_1(%arg0: i32) -> (i32, i32) {
    %c0_i32 = arith.constant 0 : i32
    %c0_i32_0 = arith.constant 0 : i32
    %c0_i32_1 = arith.constant 0 : i32
    return %c0_i32, %c0_i32_0 : i32, i32
  }
  func.func @transform_2(%arg0: i32) -> (i32, i32) {
    %c0_i32 = arith.constant 0 : i32
    %c0_i32_0 = arith.constant 0 : i32
    return %arg0, %c0_i32 : i32, i32
  }
}

</mosaic_0001>

<llo_original>
// kernel: tpu_custom_call.1
$region0: #{tpu_custom_call.1}
  #allocation0 [shape = 'u32[]', space=smem, size = 0x4, offset = 0x4, fixed_abs, tag = 'smem constant byte address 0x4 - core index']
  #allocation1 [shape = 'u32[144,128]{1,0:T(1,128)}', space=vmem, size = 0x12000, scoped, tag = 'internal scratch']
  %s0 = inlined_call_operand.hbm [shape: f32[16,24], index: 0, kind: input, shape index: {}]
  %s1 = inlined_call_operand.hbm [shape: f32[24,128], index: 1, kind: input, shape index: {}]
  %s2 = inlined_call_operand.hbm [shape: f32[16,128], index: 2, kind: output, shape index: {}]
  %s3 = sld [smem:[#allocation0]]
  $region26: #{tpu_custom_call.1} parent=0
    _
  %s5 = ssub.s32 1, %s3
  %s6 = scalar_select 0, %s5, %s3
  $region1: #{tpu_custom_call.1} parent=0
    #allocation2 [shape = 'u8[8192]{0}', space=vmem, size = 0x2000, scoped, tag = 'input window, operand 0, single buffered']
    #allocation3 [shape = 's32[1]{0}', space=sflag, size = 0x4, scoped, tag = 'scoped memory for tpu_custom_call.1']
    #allocation4 [shape = 's32[1]{0}', space=sflag, size = 0x4, scoped, tag = 'scoped memory for tpu_custom_call.1']
    #allocation5 [shape = 'u8[12288]{0}', space=vmem, size = 0x3000, scoped, tag = 'input window, operand 1, single buffered']
    #allocation6 [shape = 's32[1]{0}', space=sflag, size = 0x4, scoped, tag = 'scoped memory for tpu_custom_call.1']
    #allocation7 [shape = 'u8[8192]{0}', space=vmem, size = 0x2000, scoped, tag = 'output window, operand 0, single buffered']
    %7 = vsyncpa [#allocation3], 0
    %8 = vsyncpa [#allocation6], 0
    %9 = vsyncpa [#allocation4], 0
    // Predicated region
    $region2: #{tpu_custom_call.1} parent=1 // pred_check
      _
    $region3: #{tpu_custom_call.1} parent=1 // pred_check_branch
      %11 = sbr.rel (0) target = $region5
    $region4: #{tpu_custom_call.1} parent=1 // pred_region
      %s13 = ssub.s32 256, 256
      %14 = vsyncadd [#allocation3], %s13
      %s15 = sshll.u32 [#allocation2], 4
      %s16 = int_to_ptr.vmem [resolvable:$true] %s15
      %21 = dma.hbm_to_vmem [thread:$0]  %s0, 256, %s16, [#allocation3], 128, 128, 8
    $region5: #{tpu_custom_call.1} parent=1 // pred_fallthru
      _
    // Predicated region
    $region6: #{tpu_custom_call.1} parent=1 // pred_check
      _
    $region7: #{tpu_custom_call.1} parent=1 // pred_check_branch
      %23 = sbr.rel (0) target = $region9
    $region8: #{tpu_custom_call.1} parent=1 // pred_region
      %s25 = ssub.s32 384, 384
      %26 = vsyncadd [#allocation6], %s25
      %s27 = sshll.u32 [#allocation5], 4
      %s28 = int_to_ptr.vmem [resolvable:$true] %s27
      %33 = dma.hbm_to_vmem [thread:$0]  %s1, 384, %s28, [#allocation6], 128, 128, 8
    $region9: #{tpu_custom_call.1} parent=1 // pred_fallthru
      _
    // Predicated region
    $region10: #{tpu_custom_call.1} parent=1 // pred_check
      _
    $region11: #{tpu_custom_call.1} parent=1 // pred_check_branch
      %35 = sbr.rel (0) target = $region13
    $region12: #{tpu_custom_call.1} parent=1 // pred_region
      %36 = dma.done [#allocation3], 256
    $region13: #{tpu_custom_call.1} parent=1 // pred_fallthru
      _
    // Predicated region
    $region14: #{tpu_custom_call.1} parent=1 // pred_check
      _
    $region15: #{tpu_custom_call.1} parent=1 // pred_check_branch
      %38 = sbr.rel (0) target = $region17
    $region16: #{tpu_custom_call.1} parent=1 // pred_region
      %39 = dma.done [#allocation6], 384
    $region17: #{tpu_custom_call.1} parent=1 // pred_fallthru
      _
    %v40 = vld [vmem:[#allocation2] sm:$0xff]
    %v41 = vld [vmem:[#allocation2 + $0x8] sm:$0xff]
    %v42 = vld [vmem:[#allocation5] sm:$0xff]
    %v43 = vld [vmem:[#allocation5 + $0x8] sm:$0xff]
    %v44 = vld [vmem:[#allocation5 + $0x10] sm:$0xff]
    %vm45 = vcmask 195584
    %v47 = vsel %vm45, %v40, 0
    %v50 = vsel %vm45, %v41, 0
    %52 = vmatprep.subr.mxu0 0.0
    %53 = vmatpush1.msra.mxu0 %v42
    %54 = vmatprep.subr.mxu0 0.0
    %55 = vmatpush1.msra.mxu0 %v43
    %56 = vmatprep.subr.mxu0 0.0
    %57 = vmatpush1.msra.mxu0 %v44
    %58 = vmatprep.subr.mxu0 0.0
    %59 = vmatpush1.msra.mxu0 0.0
    %60 = vmatprep.subr.mxu0 0.0
    %61 = vmatpush1.msra.mxu0 0.0
    %62 = vmatprep.subr.mxu0 0.0
    %63 = vmatpush1.msra.mxu0 0.0
    %64 = vmatprep.subr.mxu0 0.0
    %65 = vmatpush1.msra.mxu0 0.0
    %66 = vmatprep.subr.mxu0 0.0
    %67 = vmatpush1.msra.mxu0 0.0
    %68 = vmatprep.subr.mxu0 0.0
    %69 = vmatpush1.msra.mxu0 0.0
    %70 = vmatprep.subr.mxu0 0.0
    %71 = vmatpush1.msra.mxu0 0.0
    %72 = vmatprep.subr.mxu0 0.0
    %73 = vmatpush1.msra.mxu0 0.0
    %74 = vmatprep.subr.mxu0 0.0
    %75 = vmatpush1.msra.mxu0 0.0
    %76 = vmatprep.subr.mxu0 0.0
    %77 = vmatpush1.msra.mxu0 0.0
    %78 = vmatprep.subr.mxu0 0.0
    %79 = vmatpush1.msra.mxu0 0.0
    %80 = vmatprep.subr.mxu0 0.0
    %81 = vmatpush1.msra.mxu0 0.0
    %82 = vmatprep.subr.mxu0 0.0
    %83 = vmatpush1.msra.mxu0 0.0
    %84 = vmatprep.subr.mxu0 0.0
    %85 = vmatpush1.msra.mxu0 0.0
    %86 = vmatprep.subr.mxu0 0.0
    %87 = vmatpush1.msra.mxu0 0.0
    %88 = vmatprep.subr.mxu0 0.0
    %89 = vmatpush1.msra.mxu0 0.0
    %90 = vmatprep.subr.mxu0 0.0
    %91 = vmatpush1.msra.mxu0 0.0
    %92 = vmatprep.subr.mxu0 0.0
    %93 = vmatpush1.msra.mxu0 0.0
    %94 = vmatprep.subr.mxu0 0.0
    %95 = vmatpush1.msra.mxu0 0.0
    %96 = vmatprep.subr.mxu0 0.0
    %97 = vmatpush1.msra.mxu0 0.0
    %98 = vmatprep.subr.mxu0 0.0
    %99 = vmatpush1.msra.mxu0 0.0
    %100 = vmatprep.subr.mxu0 0.0
    %101 = vmatpush1.msra.mxu0 0.0
    %102 = vmatprep.subr.mxu0 0.0
    %103 = vmatpush1.msra.mxu0 0.0
    %104 = vmatprep.subr.mxu0 0.0
    %105 = vmatpush1.msra.mxu0 0.0
    %106 = vmatprep.subr.mxu0 0.0
    %107 = vmatpush1.msra.mxu0 0.0
    %108 = vmatprep.subr.mxu0 0.0
    %109 = vmatpush1.msra.mxu0 0.0
    %110 = vmatprep.subr.mxu0 0.0
    %111 = vmatpush1.msra.mxu0 0.0
    %112 = vmatprep.subr.mxu0 0.0
    %113 = vmatpush1.msra.mxu0 0.0
    %114 = vmatprep.subr.mxu0 0.0
    %115 = vmatpush1.msra.mxu0 0.0
    %116 = vmatprep.mubr.f32.mxu0 0.0
    %117 = vmatmul.mubr.f32.gmra.mrb[0].mxu0 %v47
    %v118 = vpop.f32.mrb[0].mxu0
    %v119 = vadd.f32 0.0, %v118
    %v120 = vpop.f32.mrb[0].mxu0
    %121 = vmatprep.mubr.f32.mxu0 0.0
    %122 = vmatmul.mubr.f32.gmra.mrb[0].mxu0 %v50
    %v123 = vpop.f32.mrb[0].mxu0
    %v124 = vadd.f32 0.0, %v123
    %v125 = vpop.f32.mrb[0].mxu0
    %126 = vdwg.mxu0
    %127 = vst [vmem:[#allocation7] sm:$0xff] %v119
    %128 = vst [vmem:[#allocation7 + $0x8] sm:$0xff] %v124
    // Predicated region
    $region18: #{tpu_custom_call.1} parent=1 // pred_check
      _
    $region19: #{tpu_custom_call.1} parent=1 // pred_check_branch
      %130 = sbr.rel (0) target = $region21
    $region20: #{tpu_custom_call.1} parent=1 // pred_region
      %s132 = ssub.s32 256, 256
      %133 = vsyncadd [#allocation4], %s132
      %s134 = sshll.u32 [#allocation7], 4
      %s135 = int_to_ptr.vmem [resolvable:$true] %s134
      %140 = dma.vmem_to_hbm [thread:$0]  %s135, 256, %s2, [#allocation4], 128, 128, 8
    $region21: #{tpu_custom_call.1} parent=1 // pred_fallthru
      _
    // Predicated region
    $region22: #{tpu_custom_call.1} parent=1 // pred_check
      _
    $region23: #{tpu_custom_call.1} parent=1 // pred_check_branch
      %142 = sbr.rel (0) target = $region25
    $region24: #{tpu_custom_call.1} parent=1 // pred_region
      %143 = dma.done [#allocation4], 256
    $region25: #{tpu_custom_call.1} parent=1 // pred_fallthru
      _
    %144 = vsyncpa [#allocation3], 1
    %145 = vsyncpa [#allocation6], 1
    %146 = vsyncpa [#allocation4], 1

</llo_original>
